<compile_context>
chip_gen: v7x
topology: tpu7x:2x2x1
jax: 0.10.0
libtpu: 0.0.40
codegen_flags: <defaults>
</compile_context>

<pallas_src>
import jax
import jax.numpy as jnp
from jax import lax
from jax.experimental import pallas as pl
from jax.experimental.pallas import tpu as pltpu


def _round_up(x, m):
    return ((x + m - 1) // m) * m


def transe_kernel(ent_ref,      # (Ep, Dp) entity table, VMEM-resident
                  rel_ref,      # (Rp, Dp) relation table, VMEM-resident
                  h_idx_ref,    # (TB, 1) int32
                  r_idx_ref,    # (TB, 1) int32
                  t_idx_ref,    # (TB, 1) int32
                  score_ref):   # (TB, 1) float32 output block
    ent = ent_ref[...]                          # (Ep, Dp) f32
    rel = rel_ref[...]                          # (Rp, Dp) f32
    h_idx = h_idx_ref[...]                      # (TB, 1) i32
    r_idx = r_idx_ref[...]
    t_idx = t_idx_ref[...]

    tb = h_idx.shape[0]
    num_ent = ent.shape[0]
    num_rel = rel.shape[0]

    # One-hot row selectors (VPU: iota + compare + cast).  head/tail selectors
    # are folded into a single +/-1 selector so the entity gather is one matmul.
    ent_iota = lax.broadcasted_iota(jnp.int32, (tb, num_ent), 1)
    rel_iota = lax.broadcasted_iota(jnp.int32, (tb, num_rel), 1)
    ht_sel = ((ent_iota == h_idx).astype(jnp.float32)
              - (ent_iota == t_idx).astype(jnp.float32))        # (TB, Ep)
    r_sel = (rel_iota == r_idx).astype(jnp.float32)             # (TB, Rp)

    # Gather via MXU.
    ht = jnp.dot(ht_sel, ent, preferred_element_type=jnp.float32)   # (TB, Dp)
    r_e = jnp.dot(r_sel, rel, preferred_element_type=jnp.float32)   # (TB, Dp)

    diff = ht + r_e                                                  # (TB, Dp)
    score_ref[...] = jnp.sum(jnp.abs(diff), axis=-1, keepdims=True)  # (TB, 1)


def transe_score(entity_emb, relation_emb, head, relation, tail, *, block_b=256):
    """Pallas TransE scoring: in-kernel gather (one-hot MXU) + L1 reduce."""
    B = head.shape[0]
    E, D = entity_emb.shape
    R = relation_emb.shape[0]

    # Pad tables to TPU-friendly layouts: rows -> multiple of 8 sublanes,
    # embedding dim -> multiple of 128 lanes.  Zero padding is semantically
    # inert (padded rows never selected; padded columns add 0 to the L1 sum).
    Ep = _round_up(E, 8)
    Rp = _round_up(R, 8)
    Dp = _round_up(D, 128)
    ent = jnp.pad(entity_emb.astype(jnp.float32), ((0, Ep - E), (0, Dp - D)))
    rel = jnp.pad(relation_emb.astype(jnp.float32), ((0, Rp - R), (0, Dp - D)))

    # Keep the table-resident path within a conservative VMEM budget.
    table_bytes = (Ep + Rp) * Dp * 4
    if table_bytes > 40 * 1024 * 1024:
        # TODO(synk): large-table path via manual row-gather DMA pipeline.
        raise NotImplementedError("Embedding tables too large for VMEM-resident TransE kernel")

    # Batch tile: multiple of 8 sublanes, capped at block_b.
    TB = min(block_b, _round_up(B, 8))
    Bp = _round_up(B, TB)

    def prep_idx(idx):
        idx = idx.astype(jnp.int32)
        if Bp != B:
            idx = jnp.pad(idx, (0, Bp - B))          # padded rows gather row 0
        return idx.reshape(Bp, 1)

    h = prep_idx(head)
    r = prep_idx(relation)
    t = prep_idx(tail)

    grid_spec = pltpu.PrefetchScalarGridSpec(
        num_scalar_prefetch=0,
        grid=(Bp // TB,),
        in_specs=[
            # Full tables, constant block index -> resident in VMEM for all tiles.
            pl.BlockSpec((Ep, Dp), lambda i: (0, 0)),
            pl.BlockSpec((Rp, Dp), lambda i: (0, 0)),
            # Per-tile index blocks.
            pl.BlockSpec((TB, 1), lambda i: (i, 0)),
            pl.BlockSpec((TB, 1), lambda i: (i, 0)),
            pl.BlockSpec((TB, 1), lambda i: (i, 0)),
        ],
        out_specs=pl.BlockSpec((TB, 1), lambda i: (i, 0)),
    )

    out = pl.pallas_call(
        transe_kernel,
        grid_spec=grid_spec,
        out_shape=jax.ShapeDtypeStruct((Bp, 1), jnp.float32),
        compiler_params=pltpu.CompilerParams(
            dimension_semantics=("parallel",),        # independent tiles -> 2 TCs on v7x
            vmem_limit_bytes=48 * 1024 * 1024,        # safe on v7x (64 MiB) and below
        ),
    )(ent, rel, h, r, t)

    return out[:B, 0]


if __name__ == "__main__":
    # Small shapes consistent with TransE(num_entities, num_relations, embedding_dim).
    num_entities, num_relations, embedding_dim, batch = 16, 4, 128, 8

    key = jax.random.PRNGKey(0)
    k_ent, k_rel, k_h, k_r, k_t = jax.random.split(key, 5)

    # nn.Embedding default init is N(0, 1) — mirror that deterministically.
    entity_emb = jax.random.normal(k_ent, (num_entities, embedding_dim), jnp.float32)
    relation_emb = jax.random.normal(k_rel, (num_relations, embedding_dim), jnp.float32)

    head = jax.random.randint(k_h, (batch,), 0, num_entities, jnp.int32)
    relation = jax.random.randint(k_r, (batch,), 0, num_relations, jnp.int32)
    tail = jax.random.randint(k_t, (batch,), 0, num_entities, jnp.int32)

    score = transe_score(entity_emb, relation_emb, head, relation, tail)
    jax.block_until_ready(score)

    # Pure-JAX reference for correctness.
    ref = jnp.sum(
        jnp.abs(entity_emb[head] + relation_emb[relation] - entity_emb[tail]),
        axis=1,
    )
    assert score.shape == (batch,) and score.dtype == jnp.float32
    assert jnp.allclose(score, ref, rtol=1e-5, atol=1e-5), (score, ref)

    print("KERNEL_OK")
</pallas_src>

<mosaic_0001>
module attributes {stable_mosaic.version = 11 : i64} {
  func.func @transe_kernel(%arg0: i32, %arg1: memref<16x128xf32, #tpu.memory_space<vmem>>, %arg2: memref<8x128xf32, #tpu.memory_space<vmem>>, %arg3: memref<8x1xi32, #tpu.memory_space<vmem>>, %arg4: memref<8x1xi32, #tpu.memory_space<vmem>>, %arg5: memref<8x1xi32, #tpu.memory_space<vmem>>, %arg6: memref<8x1xf32, #tpu.memory_space<vmem>>) attributes {dimension_semantics = [#tpu.dimension_semantics<parallel>], iteration_bounds = array<i64: 1>, scalar_prefetch = 0 : i64, scratch_operands = 0 : i64, tpu.core_type = #tpu.core_type<tc>, window_params = [{pipeline_mode = #tpu.pipeline_mode<synchronous>, transform_indices = @transform_0, window_bounds = array<i64: 16, 128>}, {pipeline_mode = #tpu.pipeline_mode<synchronous>, transform_indices = @transform_1, window_bounds = array<i64: 8, 128>}, {transform_indices = @transform_2, window_bounds = array<i64: 8, 1>}, {transform_indices = @transform_3, window_bounds = array<i64: 8, 1>}, {transform_indices = @transform_4, window_bounds = array<i64: 8, 1>}, {transform_indices = @transform_5, window_bounds = array<i64: 8, 1>}]} {
    %c0 = arith.constant 0 : index
    %c0_0 = arith.constant 0 : index
    %0 = vector.load %arg1[%c0, %c0_0] : memref<16x128xf32, #tpu.memory_space<vmem>>, vector<16x128xf32>
    %c0_1 = arith.constant 0 : index
    %c0_2 = arith.constant 0 : index
    %1 = vector.load %arg2[%c0_1, %c0_2] : memref<8x128xf32, #tpu.memory_space<vmem>>, vector<8x128xf32>
    %c0_3 = arith.constant 0 : index
    %c0_4 = arith.constant 0 : index
    %2 = vector.load %arg3[%c0_3, %c0_4] : memref<8x1xi32, #tpu.memory_space<vmem>>, vector<8x1xi32>
    %c0_5 = arith.constant 0 : index
    %c0_6 = arith.constant 0 : index
    %3 = vector.load %arg4[%c0_5, %c0_6] : memref<8x1xi32, #tpu.memory_space<vmem>>, vector<8x1xi32>
    %c0_7 = arith.constant 0 : index
    %c0_8 = arith.constant 0 : index
    %4 = vector.load %arg5[%c0_7, %c0_8] : memref<8x1xi32, #tpu.memory_space<vmem>>, vector<8x1xi32>
    %5 = tpu.iota {dimensions = array<i32: 1>} : vector<8x16xi32>
    %6 = tpu.iota {dimensions = array<i32: 1>} : vector<8x8xi32>
    %7 = vector.broadcast %2 : vector<8x1xi32> to vector<8x16xi32>
    %8 = arith.cmpi eq, %5, %7 : vector<8x16xi32>
    %9 = arith.extui %8 : vector<8x16xi1> to vector<8x16xi32>
    %10 = arith.sitofp %9 : vector<8x16xi32> to vector<8x16xf32>
    %11 = vector.broadcast %4 : vector<8x1xi32> to vector<8x16xi32>
    %12 = arith.cmpi eq, %5, %11 : vector<8x16xi32>
    %13 = arith.extui %12 : vector<8x16xi1> to vector<8x16xi32>
    %14 = arith.sitofp %13 : vector<8x16xi32> to vector<8x16xf32>
    %15 = arith.subf %10, %14 : vector<8x16xf32>
    %16 = vector.broadcast %3 : vector<8x1xi32> to vector<8x8xi32>
    %17 = arith.cmpi eq, %6, %16 : vector<8x8xi32>
    %18 = arith.extui %17 : vector<8x8xi1> to vector<8x8xi32>
    %19 = arith.sitofp %18 : vector<8x8xi32> to vector<8x8xf32>
    %cst = arith.constant dense<0.000000e+00> : vector<8x128xf32>
    %20 = tpu.matmul %15, %0, %cst {dimension_numbers = #tpu.dot_dimension_numbers<[1], [0], [0], [1], [0, 0, 1, 1], [], []>} : vector<8x16xf32>, vector<16x128xf32>, vector<8x128xf32> -> vector<8x128xf32>
    %cst_9 = arith.constant dense<0.000000e+00> : vector<8x128xf32>
    %21 = tpu.matmul %19, %1, %cst_9 {dimension_numbers = #tpu.dot_dimension_numbers<[1], [0], [0], [1], [0, 0, 1, 1], [], []>} : vector<8x8xf32>, vector<8x128xf32>, vector<8x128xf32> -> vector<8x128xf32>
    %22 = arith.addf %20, %21 : vector<8x128xf32>
    %23 = math.absf %22 : vector<8x128xf32>
    %cst_10 = arith.constant dense<0.000000e+00> : vector<8xf32>
    %24 = vector.multi_reduction <add>, %23, %cst_10 [1] : vector<8x128xf32> to vector<8xf32>
    %25 = vector.shape_cast %24 : vector<8xf32> to vector<8x1xf32>
    %c0_11 = arith.constant 0 : index
    %c0_12 = arith.constant 0 : index
    %26 = vector.load %arg6[%c0_11, %c0_12] : memref<8x1xf32, #tpu.memory_space<vmem>>, vector<8x1xf32>
    tpu.vector_store %arg6[%c0_11, %c0_12], %25 {strides = array<i32>} : memref<8x1xf32, #tpu.memory_space<vmem>>, vector<8x1xf32>,
    return
  }
  func.func @transform_0(%arg0: i32) -> (i32, i32) {
    %c0_i32 = arith.constant 0 : i32
    %c0_i32_0 = arith.constant 0 : i32
    %c0_i32_1 = arith.constant 0 : i32
    return %c0_i32, %c0_i32_0 : i32, i32
  }
  func.func @transform_1(%arg0: i32) -> (i32, i32) {
    %c0_i32 = arith.constant 0 : i32
    %c0_i32_0 = arith.constant 0 : i32
    %c0_i32_1 = arith.constant 0 : i32
    return %c0_i32, %c0_i32_0 : i32, i32
  }
  func.func @transform_2(%arg0: i32) -> (i32, i32) {
    %c0_i32 = arith.constant 0 : i32
    %c0_i32_0 = arith.constant 0 : i32
    return %arg0, %c0_i32 : i32, i32
  }
  func.func @transform_3(%arg0: i32) -> (i32, i32) {
    %c0_i32 = arith.constant 0 : i32
    %c0_i32_0 = arith.constant 0 : i32
    return %arg0, %c0_i32 : i32, i32
  }
  func.func @transform_4(%arg0: i32) -> (i32, i32) {
    %c0_i32 = arith.constant 0 : i32
    %c0_i32_0 = arith.constant 0 : i32
    return %arg0, %c0_i32 : i32, i32
  }
  func.func @transform_5(%arg0: i32) -> (i32, i32) {
    %c0_i32 = arith.constant 0 : i32
    %c0_i32_0 = arith.constant 0 : i32
    return %arg0, %c0_i32 : i32, i32
  }
}

</mosaic_0001>

<llo_original>
// kernel: tpu_custom_call.1
$region0: #{tpu_custom_call.1}
  #allocation0 [shape = 'u32[]', space=smem, size = 0x4, offset = 0x4, fixed_abs, tag = 'smem constant byte address 0x4 - core index']
  #allocation1 [shape = 'u32[144,128]{1,0:T(1,128)}', space=vmem, size = 0x12000, scoped, tag = 'internal scratch']
  %s0 = inlined_call_operand.vmem [shape: f32[16,128], index: 0, kind: input, shape index: {}]
  %s1 = inlined_call_operand.vmem [shape: f32[8,128], index: 1, kind: input, shape index: {}]
  %s2 = inlined_call_operand.vmem [shape: s32[8,1], index: 2, kind: input, shape index: {}]
  %s3 = inlined_call_operand.vmem [shape: s32[8,1], index: 3, kind: input, shape index: {}]
  %s4 = inlined_call_operand.vmem [shape: s32[8,1], index: 4, kind: input, shape index: {}]
  %s5 = inlined_call_operand.vmem [shape: f32[8,1], index: 5, kind: output, shape index: {}]
  %s6 = sld [smem:[#allocation0]]
  $region30: #{tpu_custom_call.1} parent=0
    _
  %s8 = ssub.s32 1, %s6
  %s9 = scalar_select 0, %s8, %s6
  // Predicated region
  $region2: #{tpu_custom_call.1} parent=0 // pred_check
    _
  $region3: #{tpu_custom_call.1} parent=0 // pred_check_branch
    %11 = sbr.rel (0) target = $region5
  $region4: #{tpu_custom_call.1} parent=0 // pred_region
    _
  $region5: #{tpu_custom_call.1} parent=0 // pred_fallthru
    _
  // Predicated region
  $region6: #{tpu_custom_call.1} parent=0 // pred_check
    _
  $region7: #{tpu_custom_call.1} parent=0 // pred_check_branch
    %13 = sbr.rel (0) target = $region9
  $region8: #{tpu_custom_call.1} parent=0 // pred_region
    _
  $region9: #{tpu_custom_call.1} parent=0 // pred_fallthru
    _
  // Predicated region
  $region10: #{tpu_custom_call.1} parent=0 // pred_check
    _
  $region11: #{tpu_custom_call.1} parent=0 // pred_check_branch
    %15 = sbr.rel (0) target = $region13
  $region12: #{tpu_custom_call.1} parent=0 // pred_region
    _
  $region13: #{tpu_custom_call.1} parent=0 // pred_fallthru
    _
  // Predicated region
  $region14: #{tpu_custom_call.1} parent=0 // pred_check
    _
  $region15: #{tpu_custom_call.1} parent=0 // pred_check_branch
    %17 = sbr.rel (0) target = $region17
  $region16: #{tpu_custom_call.1} parent=0 // pred_region
    _
  $region17: #{tpu_custom_call.1} parent=0 // pred_fallthru
    _
  // Predicated region
  $region18: #{tpu_custom_call.1} parent=0 // pred_check
    _
  $region19: #{tpu_custom_call.1} parent=0 // pred_check_branch
    %19 = sbr.rel (0) target = $region21
  $region20: #{tpu_custom_call.1} parent=0 // pred_region
    _
  $region21: #{tpu_custom_call.1} parent=0 // pred_fallthru
    _
  %v20 = vld [vmem:[%s0] sm:$0xff]
  %v21 = vld [vmem:[%s0 + $0x8] sm:$0xff]
  %v22 = vld [vmem:[%s1] sm:$0xff]
  %v23 = vld [vmem:[%s2] sm:$0xff]
  %v24 = vld [vmem:[%s3] sm:$0xff]
  %v25 = vld [vmem:[%s4] sm:$0xff]
  %v26 = vlaneseq
  %v27 = vand.u32 %v26, 127
  %28 = vset.pattern.permute.xlu0 0
  %29 = vperm.xlu0 %28, %v23
  %v30 = vpop.permute.xlu0 %29
  %vm31 = vcmp.eq.s32.totalorder %v27, %v30
  %v32 = vsel %vm31, 1, 0
  %v33 = vcvt.s32.f32 %v32
  %34 = vset.pattern.permute.xlu0 0
  %35 = vperm.xlu0 %34, %v25
  %v36 = vpop.permute.xlu0 %35
  %vm37 = vcmp.eq.s32.totalorder %v27, %v36
  %v38 = vsel %vm37, 1, 0
  %v39 = vcvt.s32.f32 %v38
  %v40 = vsub.f32 %v33, %v39
  %41 = vset.pattern.permute.xlu0 0
  %42 = vperm.xlu0 %41, %v24
  %v43 = vpop.permute.xlu0 %42
  %vm44 = vcmp.eq.s32.totalorder %v27, %v43
  %v45 = vsel %vm44, 1, 0
  %v46 = vcvt.s32.f32 %v45
  %vm47 = vcmask 64512
  %v49 = vsel %vm47, %v46, 0
  %51 = vmatprep.subr.mxu0 0.0
  %52 = vmatpush1.msra.mxu0 %v22
  %53 = vmatprep.subr.mxu0 0.0
  %54 = vmatpush1.msra.mxu0 0.0
  %55 = vmatprep.subr.mxu0 0.0
  %56 = vmatpush1.msra.mxu0 0.0
  %57 = vmatprep.subr.mxu0 0.0
  %58 = vmatpush1.msra.mxu0 0.0
  %59 = vmatprep.subr.mxu0 0.0
  %60 = vmatpush1.msra.mxu0 0.0
  %61 = vmatprep.subr.mxu0 0.0
  %62 = vmatpush1.msra.mxu0 0.0
  %63 = vmatprep.subr.mxu0 0.0
  %64 = vmatpush1.msra.mxu0 0.0
  %65 = vmatprep.subr.mxu0 0.0
  %66 = vmatpush1.msra.mxu0 0.0
  %67 = vmatprep.subr.mxu0 0.0
  %68 = vmatpush1.msra.mxu0 0.0
  %69 = vmatprep.subr.mxu0 0.0
  %70 = vmatpush1.msra.mxu0 0.0
  %71 = vmatprep.subr.mxu0 0.0
  %72 = vmatpush1.msra.mxu0 0.0
  %73 = vmatprep.subr.mxu0 0.0
  %74 = vmatpush1.msra.mxu0 0.0
  %75 = vmatprep.subr.mxu0 0.0
  %76 = vmatpush1.msra.mxu0 0.0
  %77 = vmatprep.subr.mxu0 0.0
  %78 = vmatpush1.msra.mxu0 0.0
  %79 = vmatprep.subr.mxu0 0.0
  %80 = vmatpush1.msra.mxu0 0.0
  %81 = vmatprep.subr.mxu0 0.0
  %82 = vmatpush1.msra.mxu0 0.0
  %83 = vmatprep.subr.mxu0 0.0
  %84 = vmatpush1.msra.mxu0 0.0
  %85 = vmatprep.subr.mxu0 0.0
  %86 = vmatpush1.msra.mxu0 0.0
  %87 = vmatprep.subr.mxu0 0.0
  %88 = vmatpush1.msra.mxu0 0.0
  %89 = vmatprep.subr.mxu0 0.0
  %90 = vmatpush1.msra.mxu0 0.0
  %91 = vmatprep.subr.mxu0 0.0
  %92 = vmatpush1.msra.mxu0 0.0
  %93 = vmatprep.subr.mxu0 0.0
  %94 = vmatpush1.msra.mxu0 0.0
  %95 = vmatprep.subr.mxu0 0.0
  %96 = vmatpush1.msra.mxu0 0.0
  %97 = vmatprep.subr.mxu0 0.0
  %98 = vmatpush1.msra.mxu0 0.0
  %99 = vmatprep.subr.mxu0 0.0
  %100 = vmatpush1.msra.mxu0 0.0
  %101 = vmatprep.subr.mxu0 0.0
  %102 = vmatpush1.msra.mxu0 0.0
  %103 = vmatprep.subr.mxu0 0.0
  %104 = vmatpush1.msra.mxu0 0.0
  %105 = vmatprep.subr.mxu0 0.0
  %106 = vmatpush1.msra.mxu0 0.0
  %107 = vmatprep.subr.mxu0 0.0
  %108 = vmatpush1.msra.mxu0 0.0
  %109 = vmatprep.subr.mxu0 0.0
  %110 = vmatpush1.msra.mxu0 0.0
  %111 = vmatprep.subr.mxu0 0.0
  %112 = vmatpush1.msra.mxu0 0.0
  %113 = vmatprep.subr.mxu0 0.0
  %114 = vmatpush1.msra.mxu0 0.0
  %115 = vmatprep.mubr.f32.mxu0 0.0
  %116 = vmatmul.mubr.f32.gmra.mrb[0].mxu0 %v49
  %v117 = vpop.f32.mrb[0].mxu0
  %v118 = vadd.f32 0.0, %v117
  %v119 = vpop.f32.mrb[0].mxu0
  %120 = vdwg.mxu0
  %vm121 = vcmask 130048
  %v123 = vsel %vm121, %v40, 0
  %125 = vmatprep.subr.mxu0 0.0
  %126 = vmatpush1.msra.mxu0 %v20
  %127 = vmatprep.subr.mxu0 0.0
  %128 = vmatpush1.msra.mxu0 %v21
  %129 = vmatprep.subr.mxu0 0.0
  %130 = vmatpush1.msra.mxu0 0.0
  %131 = vmatprep.subr.mxu0 0.0
  %132 = vmatpush1.msra.mxu0 0.0
  %133 = vmatprep.subr.mxu0 0.0
  %134 = vmatpush1.msra.mxu0 0.0
  %135 = vmatprep.subr.mxu0 0.0
  %136 = vmatpush1.msra.mxu0 0.0
  %137 = vmatprep.subr.mxu0 0.0
  %138 = vmatpush1.msra.mxu0 0.0
  %139 = vmatprep.subr.mxu0 0.0
  %140 = vmatpush1.msra.mxu0 0.0
  %141 = vmatprep.subr.mxu0 0.0
  %142 = vmatpush1.msra.mxu0 0.0
  %143 = vmatprep.subr.mxu0 0.0
  %144 = vmatpush1.msra.mxu0 0.0
  %145 = vmatprep.subr.mxu0 0.0
  %146 = vmatpush1.msra.mxu0 0.0
  %147 = vmatprep.subr.mxu0 0.0
  %148 = vmatpush1.msra.mxu0 0.0
  %149 = vmatprep.subr.mxu0 0.0
  %150 = vmatpush1.msra.mxu0 0.0
  %151 = vmatprep.subr.mxu0 0.0
  %152 = vmatpush1.msra.mxu0 0.0
  %153 = vmatprep.subr.mxu0 0.0
  %154 = vmatpush1.msra.mxu0 0.0
  %155 = vmatprep.subr.mxu0 0.0
  %156 = vmatpush1.msra.mxu0 0.0
  %157 = vmatprep.subr.mxu0 0.0
  %158 = vmatpush1.msra.mxu0 0.0
  %159 = vmatprep.subr.mxu0 0.0
  %160 = vmatpush1.msra.mxu0 0.0
  %161 = vmatprep.subr.mxu0 0.0
  %162 = vmatpush1.msra.mxu0 0.0
  %163 = vmatprep.subr.mxu0 0.0
  %164 = vmatpush1.msra.mxu0 0.0
  %165 = vmatprep.subr.mxu0 0.0
  %166 = vmatpush1.msra.mxu0 0.0
  %167 = vmatprep.subr.mxu0 0.0
  %168 = vmatpush1.msra.mxu0 0.0
  %169 = vmatprep.subr.mxu0 0.0
  %170 = vmatpush1.msra.mxu0 0.0
  %171 = vmatprep.subr.mxu0 0.0
  %172 = vmatpush1.msra.mxu0 0.0
  %173 = vmatprep.subr.mxu0 0.0
  %174 = vmatpush1.msra.mxu0 0.0
  %175 = vmatprep.subr.mxu0 0.0
  %176 = vmatpush1.msra.mxu0 0.0
  %177 = vmatprep.subr.mxu0 0.0
  %178 = vmatpush1.msra.mxu0 0.0
  %179 = vmatprep.subr.mxu0 0.0
  %180 = vmatpush1.msra.mxu0 0.0
  %181 = vmatprep.subr.mxu0 0.0
  %182 = vmatpush1.msra.mxu0 0.0
  %183 = vmatprep.subr.mxu0 0.0
  %184 = vmatpush1.msra.mxu0 0.0
  %185 = vmatprep.subr.mxu0 0.0
  %186 = vmatpush1.msra.mxu0 0.0
  %187 = vmatprep.subr.mxu0 0.0
  %188 = vmatpush1.msra.mxu0 0.0
  %189 = vmatprep.mubr.f32.mxu0 0.0
  %190 = vmatmul.mubr.f32.gmra.mrb[0].mxu0 %v123
  %v191 = vpop.f32.mrb[0].mxu0
  %v192 = vadd.f32 %v118, %v191
  %v193 = vpop.f32.mrb[0].mxu0
  %194 = vdwg.mxu0
  %v195 = vand.u32 2147483647, %v192
  %196 = vadd.xlane.f32.xlu0 %v195
  %v197 = vpop.xlane.xlu0 %196
  %vm198 = vcmask 7168
  %199 = vst.msk [vmem:[%s5] sm:$0xff] %vm198, %v197
  // Predicated region
  $region22: #{tpu_custom_call.1} parent=0 // pred_check
    _
  $region23: #{tpu_custom_call.1} parent=0 // pred_check_branch
    %201 = sbr.rel (0) target = $region25
  $region24: #{tpu_custom_call.1} parent=0 // pred_region
    _
  $region25: #{tpu_custom_call.1} parent=0 // pred_fallthru
    _
  // Predicated region
  $region26: #{tpu_custom_call.1} parent=0 // pred_check
    _
  $region27: #{tpu_custom_call.1} parent=0 // pred_check_branch
    %203 = sbr.rel (0) target = $region29
  $region28: #{tpu_custom_call.1} parent=0 // pred_region
    _
  $region29: #{tpu_custom_call.1} parent=0 // pred_fallthru
    _

</llo_original>
